<compile_context>
chip_gen: v5e
topology: v5e:2x2
jax: 0.10.0
libtpu: 0.0.40
codegen_flags: <defaults>
</compile_context>

<pallas_src>
import functools

import jax
import jax.numpy as jnp
from jax.experimental import pallas as pl
from jax.experimental.pallas import tpu as pltpu

EPS = 1e-12
_LANE = 128


def _round_up(x, m):
    return ((x + m - 1) // m) * m


def _vmem_capacity_bytes():
    try:
        info = pltpu.get_tpu_info()
        cap = getattr(info, "vmem_capacity_bytes", None)
        if cap:
            return int(cap)
    except Exception:
        pass
    return 64 << 20  # conservative (v7x-sized) fallback


# --------------------------------------------------------------------------- #
# Fused single-pass kernel: one batch's (C, S) slab resident in VMEM.
# --------------------------------------------------------------------------- #
def _fused_kernel(x_ref, g_ref, b_ref, o_ref, *, inv_n, eps):
    x = x_ref[0].astype(jnp.float32)                          # (C, S)
    row_sum = jnp.sum(x, axis=1, keepdims=True)               # (C, 1) lane reduce
    mean = jnp.sum(row_sum, axis=0, keepdims=True) * inv_n    # (1, 1)
    centered = x - mean
    row_sq = jnp.sum(centered * centered, axis=1, keepdims=True)
    var = jnp.sum(row_sq, axis=0, keepdims=True) * inv_n      # exact (centered) var
    inv = jax.lax.rsqrt(var + eps)
    scale = g_ref[...] * inv                                  # (C, 1)
    shift = b_ref[...] - mean * scale                         # (C, 1)
    o_ref[0] = (x * scale + shift).astype(o_ref.dtype)


# --------------------------------------------------------------------------- #
# Streaming two-pass kernels.
# --------------------------------------------------------------------------- #
def _stats_kernel(x_ref, sum_ref, sq_ref, *, s_total, ts):
    """Per-tile, per-channel partial [sum, sumsq]; ragged tail masked in-kernel."""
    x = x_ref[0].astype(jnp.float32)                          # (C, ts)
    if s_total % ts != 0:                                     # static: only if ragged
        col = jax.lax.broadcasted_iota(jnp.int32, x.shape, 1)
        start = pl.program_id(1) * ts
        x = jnp.where(start + col < s_total, x, 0.0)
    sum_ref[0, 0] = jnp.sum(x, axis=1, keepdims=True)         # (C, 1)
    sq_ref[0, 0] = jnp.sum(x * x, axis=1, keepdims=True)      # (C, 1)


def _normalize_kernel(x_ref, scale_ref, shift_ref, o_ref):
    """Fused affine normalize: y = x * scale + shift (per batch & channel)."""
    x = x_ref[0].astype(jnp.float32)                          # (C, ts)
    o_ref[0] = (x * scale_ref[0] + shift_ref[0]).astype(o_ref.dtype)


# --------------------------------------------------------------------------- #
# Wrapper.
# --------------------------------------------------------------------------- #
def global_layer_norm(x, gamma, beta, eps=EPS, *, _force_two_pass=False, _max_ts=None):
    """x: (B, C, *spatial); gamma, beta: (C,).  Returns same shape/dtype as x."""
    orig_shape = x.shape
    B, C = orig_shape[0], orig_shape[1]
    S = 1
    for d in orig_shape[2:]:
        S *= d
    if B == 0 or C == 0 or S == 0:
        return x

    x3 = x.reshape(B, C, S)
    dtype = x.dtype
    itemsize = jnp.dtype(dtype).itemsize
    inv_n = 1.0 / float(C * S)

    g32 = gamma.astype(jnp.float32).reshape(C, 1)
    b32 = beta.astype(jnp.float32).reshape(C, 1)

    # ---- per-generation VMEM budgets ----------------------------------------
    vmem_cap = _vmem_capacity_bytes()
    big_vmem = vmem_cap >= (96 << 20)               # v5e/v6e: 128 MiB; v7x: 64 MiB
    usable_limit = (100 << 20) if big_vmem else (44 << 20)   # vmem_limit_bytes cap
    fused_cap = (64 << 20) if big_vmem else (26 << 20)       # live-footprint gate
    pass1_budget = (32 << 20) if big_vmem else (12 << 20)    # 2x input buffers
    pass2_budget = (48 << 20) if big_vmem else (20 << 20)    # 2x in + 2x out + temps

    sub_pack = max(8, 32 // itemsize)               # sublane packing (8 f32 / 16 bf16)
    c_pad = _round_up(C, sub_pack)
    s_lane = _round_up(S, _LANE)

    def clamp_limit(estimate):
        return int(max(8 << 20, min(int(estimate * 1.25) + (2 << 20), usable_limit)))

    # ---- fused single-pass path (read once + write once) --------------------
    # Footprint: double-buffered in + out slabs plus ~3 f32 compute temps.
    fused_bytes = c_pad * s_lane * (4 * itemsize + 3 * 4) + (1 << 20)
    if not _force_two_pass and fused_bytes <= fused_cap:
        y = pl.pallas_call(
            functools.partial(_fused_kernel, inv_n=inv_n, eps=float(eps)),
            out_shape=jax.ShapeDtypeStruct((B, C, S), dtype),
            grid_spec=pltpu.PrefetchScalarGridSpec(
                num_scalar_prefetch=0,
                grid=(B,),
                in_specs=[
                    pl.BlockSpec((1, C, S), lambda b: (b, 0, 0)),
                    pl.BlockSpec((C, 1), lambda b: (0, 0)),
                    pl.BlockSpec((C, 1), lambda b: (0, 0)),
                ],
                out_specs=pl.BlockSpec((1, C, S), lambda b: (b, 0, 0)),
            ),
            compiler_params=pltpu.CompilerParams(
                dimension_semantics=("parallel",),
                vmem_limit_bytes=clamp_limit(fused_bytes),
            ),
            cost_estimate=pl.CostEstimate(
                flops=int(7 * B * C * S),
                transcendentals=int(B),
                bytes_accessed=int(2 * B * C * S * itemsize),
            ),
        )(x3, g32, b32)
        return y.reshape(orig_shape)

    # ---- streaming two-pass path --------------------------------------------
    # TODO(synk): extremely large C (per-lane bytes exceeding the tile budget)
    # would additionally need channel tiling / (B*C, S) sublane flattening.
    def pick_ts(per_lane_bytes, budget):
        ts = (budget // max(1, per_lane_bytes)) // _LANE * _LANE
        if _max_ts is not None:
            ts = min(ts, max(_LANE, _max_ts // _LANE * _LANE))
        ts = max(_LANE, ts)
        return S if ts >= S else ts               # single full-extent tile if it fits

    # pass 1: per-channel partial sums (no carried accumulator -> fully parallel,
    # so v7x's two TensorCores both get work even when B == 1).
    per_lane_p1 = c_pad * (2 * itemsize + 4)      # 2 in bufs + f32 upcast temp
    ts1 = pick_ts(per_lane_p1, pass1_budget)
    t1 = -(-S // ts1)
    stats_sum, stats_sq = pl.pallas_call(
        functools.partial(_stats_kernel, s_total=S, ts=ts1),
        out_shape=(
            jax.ShapeDtypeStruct((B, t1, C, 1), jnp.float32),
            jax.ShapeDtypeStruct((B, t1, C, 1), jnp.float32),
        ),
        grid_spec=pltpu.PrefetchScalarGridSpec(
            num_scalar_prefetch=0,
            grid=(B, t1),
            in_specs=[pl.BlockSpec((1, C, ts1), lambda b, s: (b, 0, s))],
            out_specs=(
                pl.BlockSpec((1, 1, C, 1), lambda b, s: (b, s, 0, 0)),
                pl.BlockSpec((1, 1, C, 1), lambda b, s: (b, s, 0, 0)),
            ),
        ),
        compiler_params=pltpu.CompilerParams(
            dimension_semantics=("parallel", "parallel"),
            vmem_limit_bytes=clamp_limit(per_lane_p1 * _round_up(ts1, _LANE)),
        ),
        cost_estimate=pl.CostEstimate(
            flops=int(3 * B * C * S),
            transcendentals=0,
            bytes_accessed=int(B * C * S * itemsize + 2 * B * t1 * C * 4),
        ),
    )(x3)

    # ---- tiny (B, C) glue: fold mean/var/gamma/beta into scale/shift ---------
    sum_x = jnp.sum(stats_sum, axis=(1, 2, 3))                # (B,)
    sum_xx = jnp.sum(stats_sq, axis=(1, 2, 3))                # (B,)
    mean = sum_x * inv_n
    # One-pass E[x^2]-mean^2 (clamped); the fused path uses the exact centered form.
    var = jnp.maximum(sum_xx * inv_n - mean * mean, 0.0)
    inv = jax.lax.rsqrt(var + eps)
    scale = g32.reshape(1, C) * inv[:, None]                  # (B, C)
    shift = b32.reshape(1, C) - mean[:, None] * scale         # (B, C)
    scale = scale.reshape(B, C, 1)
    shift = shift.reshape(B, C, 1)

    # pass 2: fused normalize + affine, fully parallel.  Ragged boundary blocks
    # write only the in-bounds lanes (Pallas clips OOB block writes), so no
    # pad / slice HBM round-trips are needed.
    per_lane_p2 = c_pad * (4 * itemsize + 2 * 4)              # 2 in + 2 out + f32 temps
    ts2 = pick_ts(per_lane_p2, pass2_budget)
    t2 = -(-S // ts2)
    y = pl.pallas_call(
        _normalize_kernel,
        out_shape=jax.ShapeDtypeStruct((B, C, S), dtype),
        grid_spec=pltpu.PrefetchScalarGridSpec(
            num_scalar_prefetch=0,
            grid=(B, t2),
            in_specs=[
                pl.BlockSpec((1, C, ts2), lambda b, s: (b, 0, s)),
                pl.BlockSpec((1, C, 1), lambda b, s: (b, 0, 0)),
                pl.BlockSpec((1, C, 1), lambda b, s: (b, 0, 0)),
            ],
            out_specs=pl.BlockSpec((1, C, ts2), lambda b, s: (b, 0, s)),
        ),
        compiler_params=pltpu.CompilerParams(
            dimension_semantics=("parallel", "parallel"),
            vmem_limit_bytes=clamp_limit(per_lane_p2 * _round_up(ts2, _LANE)),
        ),
        cost_estimate=pl.CostEstimate(
            flops=int(2 * B * C * S),
            transcendentals=0,
            bytes_accessed=int(2 * B * C * S * itemsize + 2 * B * C * 4),
        ),
    )(x3, scale, shift)

    return y.reshape(orig_shape)


def global_layer_norm_ref(x, gamma, beta, eps=EPS):
    """Pure-JAX reference (GroupNorm(1, C))."""
    B, C = x.shape[0], x.shape[1]
    xf = x.reshape(B, -1).astype(jnp.float32)
    mean = jnp.mean(xf, axis=1, keepdims=True)
    var = jnp.mean((xf - mean) ** 2, axis=1, keepdims=True)
    x_hat = ((xf - mean) / jnp.sqrt(var + eps)).reshape(x.shape)
    bcast = (1, C) + (1,) * (x.ndim - 2)
    return (x_hat * gamma.reshape(bcast) + beta.reshape(bcast)).astype(x.dtype)


if __name__ == "__main__":
    key = jax.random.PRNGKey(0)
    kx, kg, kb, kx2, kx3 = jax.random.split(key, 5)

    B, C = 2, 4
    # GroupNorm default init is weight=1 / bias=0; perturb so the affine path
    # is actually exercised.
    gamma = jnp.ones((C,), jnp.float32) + 0.1 * jax.random.normal(kg, (C,), jnp.float32)
    beta = 0.1 * jax.random.normal(kb, (C,), jnp.float32)

    # Case 1: lane-aligned spatial size -> fused single-pass path.
    x1 = jax.random.normal(kx, (B, C, 16, 16), dtype=jnp.float32)
    y1 = jax.block_until_ready(global_layer_norm(x1, gamma, beta))
    assert y1.shape == x1.shape
    assert jnp.allclose(y1, global_layer_norm_ref(x1, gamma, beta),
                        atol=1e-4, rtol=1e-4), "mismatch (fused, aligned S)"

    # Case 2: unaligned spatial size (S=100) -> fused path, no pad/slice needed.
    x2 = jax.random.normal(kx2, (B, C, 10, 10), dtype=jnp.float32)
    y2 = jax.block_until_ready(global_layer_norm(x2, gamma, beta))
    assert y2.shape == x2.shape
    assert jnp.allclose(y2, global_layer_norm_ref(x2, gamma, beta),
                        atol=1e-4, rtol=1e-4), "mismatch (fused, unaligned S)"

    # Case 3: force the streaming two-pass path with small tiles so the ragged
    # S tail exercises in-kernel masking (pass 1) and clipped writeback (pass 2).
    x3 = jax.random.normal(kx3, (B, C, 13, 20), dtype=jnp.float32)   # S = 260
    y3 = jax.block_until_ready(
        global_layer_norm(x3, gamma, beta, _force_two_pass=True, _max_ts=128))
    assert y3.shape == x3.shape
    assert jnp.allclose(y3, global_layer_norm_ref(x3, gamma, beta),
                        atol=1e-4, rtol=1e-4), "mismatch (two-pass, ragged tail)"

    print("KERNEL_OK")
</pallas_src>

<mosaic_0001>
module attributes {stable_mosaic.version = 11 : i64} {
  func.func @_fused_kernel(%arg0: i32, %arg1: memref<1x4x256xf32, #tpu.memory_space<vmem>>, %arg2: memref<4x1xf32, #tpu.memory_space<vmem>>, %arg3: memref<4x1xf32, #tpu.memory_space<vmem>>, %arg4: memref<1x4x256xf32, #tpu.memory_space<vmem>>) attributes {dimension_semantics = [#tpu.dimension_semantics<parallel>], iteration_bounds = array<i64: 2>, scalar_prefetch = 0 : i64, scratch_operands = 0 : i64, tpu.core_type = #tpu.core_type<tc>, window_params = [{transform_indices = @transform_0, window_bounds = array<i64: 1, 4, 256>}, {pipeline_mode = #tpu.pipeline_mode<synchronous>, transform_indices = @transform_1, window_bounds = array<i64: 4, 1>}, {pipeline_mode = #tpu.pipeline_mode<synchronous>, transform_indices = @transform_2, window_bounds = array<i64: 4, 1>}, {transform_indices = @transform_3, window_bounds = array<i64: 1, 4, 256>}]} {
    %c0 = arith.constant 0 : index
    %c0_0 = arith.constant 0 : index
    %c0_1 = arith.constant 0 : index
    %0 = vector.load %arg1[%c0, %c0_0, %c0_1] : memref<1x4x256xf32, #tpu.memory_space<vmem>>, vector<1x4x256xf32>
    %1 = vector.shape_cast %0 : vector<1x4x256xf32> to vector<4x256xf32>
    %cst = arith.constant dense<0.000000e+00> : vector<4xf32>
    %2 = vector.multi_reduction <add>, %1, %cst [1] : vector<4x256xf32> to vector<4xf32>
    %3 = vector.shape_cast %2 : vector<4xf32> to vector<4x1xf32>
    %cst_2 = arith.constant dense<0.000000e+00> : vector<1xf32>
    %4 = vector.multi_reduction <add>, %3, %cst_2 [0] : vector<4x1xf32> to vector<1xf32>
    %5 = vector.shape_cast %4 : vector<1xf32> to vector<1x1xf32>
    %cst_3 = arith.constant 9.765625E-4 : f32
    %6 = vector.broadcast %cst_3 : f32 to vector<1x1xf32>
    %7 = arith.mulf %5, %6 : vector<1x1xf32>
    %8 = vector.broadcast %7 : vector<1x1xf32> to vector<4x256xf32>
    %9 = arith.subf %1, %8 : vector<4x256xf32>
    %10 = arith.mulf %9, %9 : vector<4x256xf32>
    %cst_4 = arith.constant dense<0.000000e+00> : vector<4xf32>
    %11 = vector.multi_reduction <add>, %10, %cst_4 [1] : vector<4x256xf32> to vector<4xf32>
    %12 = vector.shape_cast %11 : vector<4xf32> to vector<4x1xf32>
    %cst_5 = arith.constant dense<0.000000e+00> : vector<1xf32>
    %13 = vector.multi_reduction <add>, %12, %cst_5 [0] : vector<4x1xf32> to vector<1xf32>
    %14 = vector.shape_cast %13 : vector<1xf32> to vector<1x1xf32>
    %cst_6 = arith.constant 9.765625E-4 : f32
    %15 = vector.broadcast %cst_6 : f32 to vector<1x1xf32>
    %16 = arith.mulf %14, %15 : vector<1x1xf32>
    %cst_7 = arith.constant 9.99999996E-13 : f32
    %17 = vector.broadcast %cst_7 : f32 to vector<1x1xf32>
    %18 = arith.addf %16, %17 : vector<1x1xf32>
    %19 = math.rsqrt %18 : vector<1x1xf32>
    %c0_8 = arith.constant 0 : index
    %c0_9 = arith.constant 0 : index
    %20 = vector.load %arg2[%c0_8, %c0_9] : memref<4x1xf32, #tpu.memory_space<vmem>>, vector<4x1xf32>
    %21 = vector.broadcast %19 : vector<1x1xf32> to vector<4x1xf32>
    %22 = arith.mulf %20, %21 : vector<4x1xf32>
    %c0_10 = arith.constant 0 : index
    %c0_11 = arith.constant 0 : index
    %23 = vector.load %arg3[%c0_10, %c0_11] : memref<4x1xf32, #tpu.memory_space<vmem>>, vector<4x1xf32>
    %24 = vector.broadcast %7 : vector<1x1xf32> to vector<4x1xf32>
    %25 = arith.mulf %24, %22 : vector<4x1xf32>
    %26 = arith.subf %23, %25 : vector<4x1xf32>
    %27 = vector.broadcast %22 : vector<4x1xf32> to vector<4x256xf32>
    %28 = arith.mulf %1, %27 : vector<4x256xf32>
    %29 = vector.broadcast %26 : vector<4x1xf32> to vector<4x256xf32>
    %30 = arith.addf %28, %29 : vector<4x256xf32>
    %c0_12 = arith.constant 0 : index
    %c0_13 = arith.constant 0 : index
    %c0_14 = arith.constant 0 : index
    %31 = vector.load %arg4[%c0_12, %c0_13, %c0_14] : memref<1x4x256xf32, #tpu.memory_space<vmem>>, vector<1x4x256xf32>
    %32 = vector.shape_cast %31 : vector<1x4x256xf32> to vector<4x256xf32>
    %33 = vector.shape_cast %30 : vector<4x256xf32> to vector<1x4x256xf32>
    tpu.vector_store %arg4[%c0_12, %c0_13, %c0_14], %33 {strides = array<i32>} : memref<1x4x256xf32, #tpu.memory_space<vmem>>, vector<1x4x256xf32>,
    return
  }
  func.func @transform_0(%arg0: i32) -> (i32, i32, i32) {
    %c0_i32 = arith.constant 0 : i32
    %c0_i32_0 = arith.constant 0 : i32
    %c0_i32_1 = arith.constant 0 : i32
    return %arg0, %c0_i32, %c0_i32_0 : i32, i32, i32
  }
  func.func @transform_1(%arg0: i32) -> (i32, i32) {
    %c0_i32 = arith.constant 0 : i32
    %c0_i32_0 = arith.constant 0 : i32
    %c0_i32_1 = arith.constant 0 : i32
    return %c0_i32, %c0_i32_0 : i32, i32
  }
  func.func @transform_2(%arg0: i32) -> (i32, i32) {
    %c0_i32 = arith.constant 0 : i32
    %c0_i32_0 = arith.constant 0 : i32
    %c0_i32_1 = arith.constant 0 : i32
    return %c0_i32, %c0_i32_0 : i32, i32
  }
  func.func @transform_3(%arg0: i32) -> (i32, i32, i32) {
    %c0_i32 = arith.constant 0 : i32
    %c0_i32_0 = arith.constant 0 : i32
    %c0_i32_1 = arith.constant 0 : i32
    return %arg0, %c0_i32, %c0_i32_0 : i32, i32, i32
  }
}

</mosaic_0001>

<llo_original>
// kernel: tpu_custom_call.1
$region0: #{tpu_custom_call.1}
  #allocation0 [shape = 'u32[]', space=smem, size = 0x4, offset = 0x4, fixed_abs, tag = 'smem constant byte address 0x4 - core index']
  #allocation1 [shape = 'u32[72,128]{1,0:T(1,128)}', space=vmem, size = 0x9000, scoped, tag = 'internal scratch']
  %s0 = inlined_call_operand.hbm [shape: f32[2,4,256], index: 0, kind: input, shape index: {}]
  %s1 = inlined_call_operand.vmem [shape: f32[4,1], index: 1, kind: input, shape index: {}]
  %s2 = inlined_call_operand.vmem [shape: f32[4,1], index: 2, kind: input, shape index: {}]
  %s3 = inlined_call_operand.hbm [shape: f32[2,4,256], index: 3, kind: output, shape index: {}]
  %s4 = sld [smem:[#allocation0]]
  $region49: #{tpu_custom_call.1} parent=0
    _
  %s6 = ssub.s32 1, %s4
  %s7 = scalar_select 0, %s6, %s4
  $region1: #{tpu_custom_call.1} parent=0
    #allocation2 [shape = 'u8[8192]{0}', space=vmem, size = 0x2000, scoped, tag = 'input window, operand 0']
    #allocation3 [shape = 's32[2]{0}', space=sflag, size = 0x8, scoped, tag = 'scoped memory for tpu_custom_call.1']
    #allocation4 [shape = 's32[2]{0}', space=sflag, size = 0x8, scoped, tag = 'scoped memory for tpu_custom_call.1']
    #allocation5 [shape = 'u8[8192]{0}', space=vmem, size = 0x2000, scoped, tag = 'output window, operand 0']
    %8 = vsyncpa [#allocation3], 0
    %s9 = scalar_lea.sflag [#allocation3], 1
    %10 = vsyncpa %s9, 0
    %11 = vsyncpa [#allocation4], 0
    %s12 = scalar_lea.sflag [#allocation4], 1
    %13 = vsyncpa %s12, 0
    loop: start=0, step=1, limit=4
    $region2: #{tpu_custom_call.1} parent=1 // loop_pre_header
      _
    $region3: #{tpu_custom_call.1} parent=1 // loop_header
      %s15 = sphi 0, %s19
      %p16 = scmp.ge.s32.totalorder %s15, 4
      %s25 = sphi 0, %s27
      %s28 = sphi 0, %s25
      %s29 = sphi 0, %s28
      %s45 = sphi 0, %s29
      %s49 = sphi 0, %s49
      %s51 = sphi 0, %s49
      %s52 = sphi 0, %s51
      %s66 = sphi 0, %s52
      %s70 = sphi 0, %s70
      %s72 = sphi 0, %s70
      %s73 = sphi 0, %s72
      %s87 = sphi 0, %s73
      %s93 = sphi 0, %s95
      %s96 = sphi 0, %s93
      %s97 = sphi 0, %s96
      %s113 = sphi 0, %s97
    $region4: #{tpu_custom_call.1} parent=1 // loop_header_branch
      %18 = sbr.rel (%p16) target = $region8
    $region5: #{tpu_custom_call.1} parent=1 // loop_body
      %s20 = ssub.s32 %s15, 1
      %s21 = ssub.s32 %s15, 2
      %s22 = sadd.s32 %s15, 1
      %s23 = ssub.s32 %s15, %s22
      %p24 = scmp.eq.s32.totalorder %s23, 0
      %s26 = sadd.s32 %s25, 1
      %s27 = scalar_select %p24, %s25, %s26
      %p30 = pneg %p24
      %p31 = scmp.eq.s32.totalorder %s15, 1
      %p32 = por %p30, %p31
      %p33 = scmp.ne.s32.totalorder %s25, %s28
      %p34 = scmp.eq.s32.totalorder %s15, 0
      %p35 = por %p33, %p34
      %p36 = scmp.ne.s32.totalorder %s25, %s28
      %p37 = scmp.eq.s32.totalorder %s20, 1
      %p38 = por %p36, %p37
      %p39 = scmp.ne.s32.totalorder %s28, %s29
      %p40 = scmp.eq.s32.totalorder %s20, 0
      %p41 = por %p39, %p40
      %p42 = scmp.ne.s32.totalorder %s28, %s29
      %p43 = scmp.eq.s32.totalorder %s21, 1
      %p44 = por %p42, %p43
      %p46 = scmp.ne.s32.totalorder %s29, %s45
      %p47 = scmp.eq.s32.totalorder %s21, 0
      %p48 = por %p46, %p47
      %s50 = sadd.s32 %s49, 1
      %p53 = scmp.eq.s32.totalorder %s15, 1
      %p54 = scmp.ne.s32.totalorder %s49, %s51
      %p55 = scmp.eq.s32.totalorder %s15, 0
      %p56 = por %p54, %p55
      %p57 = scmp.ne.s32.totalorder %s49, %s51
      %p58 = scmp.eq.s32.totalorder %s20, 1
      %p59 = por %p57, %p58
      %p60 = scmp.ne.s32.totalorder %s51, %s52
      %p61 = scmp.eq.s32.totalorder %s20, 0
      %p62 = por %p60, %p61
      %p63 = scmp.ne.s32.totalorder %s51, %s52
      %p64 = scmp.eq.s32.totalorder %s21, 1
      %p65 = por %p63, %p64
      %p67 = scmp.ne.s32.totalorder %s52, %s66
      %p68 = scmp.eq.s32.totalorder %s21, 0
      %p69 = por %p67, %p68
      %s71 = sadd.s32 %s70, 1
      %p74 = scmp.eq.s32.totalorder %s15, 1
      %p75 = scmp.ne.s32.totalorder %s70, %s72
      %p76 = scmp.eq.s32.totalorder %s15, 0
      %p77 = por %p75, %p76
      %p78 = scmp.ne.s32.totalorder %s70, %s72
      %p79 = scmp.eq.s32.totalorder %s20, 1
      %p80 = por %p78, %p79
      %p81 = scmp.ne.s32.totalorder %s72, %s73
      %p82 = scmp.eq.s32.totalorder %s20, 0
      %p83 = por %p81, %p82
      %p84 = scmp.ne.s32.totalorder %s72, %s73
      %p85 = scmp.eq.s32.totalorder %s21, 1
      %p86 = por %p84, %p85
      %p88 = scmp.ne.s32.totalorder %s73, %s87
      %p89 = scmp.eq.s32.totalorder %s21, 0
      %p90 = por %p88, %p89
      %s91 = ssub.s32 %s15, %s22
      %p92 = scmp.eq.s32.totalorder %s91, 0
      %s94 = sadd.s32 %s93, 1
      %s95 = scalar_select %p92, %s93, %s94
      %p98 = pneg %p92
      %p99 = scmp.eq.s32.totalorder %s15, 1
      %p100 = por %p98, %p99
      %p101 = scmp.ne.s32.totalorder %s93, %s96
      %p102 = scmp.eq.s32.totalorder %s15, 0
      %p103 = por %p101, %p102
      %p104 = scmp.ne.s32.totalorder %s93, %s96
      %p105 = scmp.eq.s32.totalorder %s20, 1
      %p106 = por %p104, %p105
      %p107 = scmp.ne.s32.totalorder %s96, %s97
      %p108 = scmp.eq.s32.totalorder %s20, 0
      %p109 = por %p107, %p108
      %p110 = scmp.ne.s32.totalorder %s96, %s97
      %p111 = scmp.eq.s32.totalorder %s21, 1
      %p112 = por %p110, %p111
      %p114 = scmp.ne.s32.totalorder %s97, %s113
      %p115 = scmp.eq.s32.totalorder %s21, 0
      %p116 = por %p114, %p115
      %p117 = scmp.le.s32.totalorder 1, %s15
      %p118 = scmp.lt.s32.totalorder %s15, 3
      %p119 = pnand %p117, %p118
      %p120 = pneg %p119
      // Predicated region
      $region9: #{tpu_custom_call.1} parent=5 // pred_check
        _
      $region10: #{tpu_custom_call.1} parent=5 // pred_check_branch
        %122 = sbr.rel (%p119) target = $region12
      $region11: #{tpu_custom_call.1} parent=5 // pred_region
        %s123 = ssub.s32 %s15, 1
        // Predicated region
        $region13: #{tpu_custom_call.1} parent=11 // pred_check
          %p124 = pneg %p62
        $region14: #{tpu_custom_call.1} parent=11 // pred_check_branch
          %126 = sbr.rel (%p124) target = $region16
        $region15: #{tpu_custom_call.1} parent=11 // pred_region
          _
        $region16: #{tpu_custom_call.1} parent=11 // pred_fallthru
          _
        // Predicated region
        $region17: #{tpu_custom_call.1} parent=11 // pred_check
          %p127 = pneg %p83
        $region18: #{tpu_custom_call.1} parent=11 // pred_check_branch
          %129 = sbr.rel (%p127) target = $region20
        $region19: #{tpu_custom_call.1} parent=11 // pred_region
          _
        $region20: #{tpu_custom_call.1} parent=11 // pred_fallthru
          _
      $region12: #{tpu_custom_call.1} parent=5 // pred_fallthru
        _
      %p130 = scmp.lt.s32.totalorder %s15, 2
      // Predicated region
      $region21: #{tpu_custom_call.1} parent=5 // pred_check
        %p131 = pneg %p130
      $region22: #{tpu_custom_call.1} parent=5 // pred_check_branch
        %133 = sbr.rel (%p131) target = $region24
      $region23: #{tpu_custom_call.1} parent=5 // pred_region
        // Predicated region
        $region25: #{tpu_custom_call.1} parent=23 // pred_check
          %p134 = pneg %p35
        $region26: #{tpu_custom_call.1} parent=23 // pred_check_branch
          %136 = sbr.rel (%p134) target = $region28
        $region27: #{tpu_custom_call.1} parent=23 // pred_region
          %s137 = sand.u32 %s25, 1
          %s138 = scalar_lea.sflag [#allocation3], %s137
          %s139 = sand.u32 %s25, 1
          %s140 = smul.addr %s139, 8
          %s141 = scalar_lea.vmem [#allocation2], %s140
          %143 = vsyncadd %s138, 0
          %s144 = smul.addr %s15, 2
          %s145 = smul.addr %s144, 4
          %s146 = scalar_lea.hbm %s0, %s145
          %s148 = sshll.u32 %s146, 4
          %s149 = int_to_ptr.hbm [resolvable:$true] %s148
          %s150 = sshll.u32 %s141, 4
          %s151 = int_to_ptr.vmem [resolvable:$true] %s150
          %153 = dma.hbm_to_vmem [thread:$0]  %s149, 128, %s151, %s138
        $region28: #{tpu_custom_call.1} parent=23 // pred_fallthru
          _
      $region24: #{tpu_custom_call.1} parent=5 // pred_fallthru
        _
      %p154 = scmp.le.s32.totalorder 1, %s15
      %p155 = scmp.lt.s32.totalorder %s15, 3
      %p156 = pnand %p154, %p155
      %p157 = pneg %p156
      // Predicated region
      $region29: #{tpu_custom_call.1} parent=5 // pred_check
        _
      $region30: #{tpu_custom_call.1} parent=5 // pred_check_branch
        %159 = sbr.rel (%p156) target = $region32
      $region31: #{tpu_custom_call.1} parent=5 // pred_region
        %s160 = ssub.s32 %s15, 1
        %s161 = sand.u32 %s28, 1
        %s162 = scalar_lea.sflag [#allocation3], %s161
        %s163 = sand.u32 %s28, 1
        %s164 = smul.addr %s163, 8
        %s165 = scalar_lea.vmem [#allocation2], %s164
        // Predicated region
        $region33: #{tpu_custom_call.1} parent=31 // pred_check
          %p166 = pneg %p41
        $region34: #{tpu_custom_call.1} parent=31 // pred_check_branch
          %168 = sbr.rel (%p166) target = $region36
        $region35: #{tpu_custom_call.1} parent=31 // pred_region
          %170 = dma.done %s162, 128
        $region36: #{tpu_custom_call.1} parent=31 // pred_fallthru
          _
        %s171 = sand.u32 %s28, 1
        %s172 = scalar_lea.sflag [#allocation3], %s171
        %s173 = sand.u32 %s28, 1
        %s174 = smul.addr %s173, 8
        %s175 = scalar_lea.vmem [#allocation2], %s174
        %p176 = pneg %p41
        %p177 = pneg %p38
        %p178 = pneg %p62
        %p179 = pneg %p59
        %p180 = pneg %p83
        %p181 = pneg %p80
        %p182 = pneg %p109
        %p183 = pneg %p106
        %s184 = sand.u32 %s96, 1
        %s185 = scalar_lea.sflag [#allocation4], %s184
        %s186 = sand.u32 %s96, 1
        %s187 = smul.addr %s186, 8
        %s188 = scalar_lea.vmem [#allocation5], %s187
        %v189 = vld [vmem:[%s165] sm:$0xff]
        %191 = vst [vmem:[#allocation1] ss:$2 sm:$0xff] %v189
        %v192 = vld.sshfl [vmem:[#allocation1] sm:$0xff pattern:$0x75316420]
        %v193 = vld.sshfl [vmem:[#allocation1 + $0x8] sm:$0xff pattern:$0x75316420]
        %vm196 = vcmask 1043456
        %v197 = vsel %vm196, %v192, 0.0
        %v198 = vsel %vm196, %v193, 0.0
        %v199 = vadd.f32 %v197, %v198
        %200 = vadd.xlane.f32.xlu0 %v199
        %v201 = vpop.xlane.xlu0 %200
        %v202 = vsel %vm196, %v201, 0.0
        %v203 = vrot.slane %v202, 4
        %v204 = vadd.f32 %v202, %v203
        %v205 = vrot.slane %v204, 2
        %v206 = vadd.f32 %v204, %v205
        %v207 = vrot.slane %v206, 1
        %v208 = vadd.f32 %v206, %v207
        %v209 = vmul.f32 %v208, 0.0009765625
        %v210 = vsub.f32 %v189, %v209
        %v211 = vmul.f32 %v210, %v210
        %213 = vst [vmem:[#allocation1] ss:$2 sm:$0xff] %v211
        %v214 = vld.sshfl [vmem:[#allocation1] sm:$0xff pattern:$0x75316420]
        %v215 = vld.sshfl [vmem:[#allocation1 + $0x8] sm:$0xff pattern:$0x75316420]
        %v218 = vsel %vm196, %v214, 0.0
        %v219 = vsel %vm196, %v215, 0.0
        %v220 = vadd.f32 %v218, %v219
        %221 = vadd.xlane.f32.xlu0 %v220
        %v222 = vpop.xlane.xlu0 %221
        %v223 = vsel %vm196, %v222, 0.0
        %v224 = vrot.slane %v223, 4
        %v225 = vadd.f32 %v223, %v224
        %v226 = vrot.slane %v225, 2
        %v227 = vadd.f32 %v225, %v226
        %v228 = vrot.slane %v227, 1
        %v229 = vadd.f32 %v227, %v228
        %v230 = vmul.f32 %v229, 0.0009765625
        %v231 = vadd.f32 %v230, 1e-12
        %v232 = vrsqrt.pop %v231
        %v233 = vmul.f32 %v232, %v231
        %v234 = vmul.f32 %v233, %v232
        %v235 = vmul.f32 0.5, %v234
        %v236 = vsub.f32 1.5, %v235
        %v237 = vmul.f32 %v232, %v236
        %vm238 = vweird.f32 %v231
        %vm239 = vweird.f32 %v232
        %vm240 = vmor %vm238, %vm239
        %v241 = vsel %vm240, %v232, %v237
        %v242 = vld [vmem:[%s1] sm:$0xf]
        %v243 = vmul.f32 %v242, %v241
        %v244 = vld [vmem:[%s2] sm:$0xf]
        %v245 = vmul.f32 %v209, %v243
        %v246 = vsub.f32 %v244, %v245
        %248 = vset.pattern.permute.xlu0 0
        %249 = vperm.xlu0 %248, %v243
        %v250 = vpop.permute.xlu0 %249
        %v252 = vunpack.c.l.s4 839922192
        %v253 = vunpack.c.0.s8 %v252
        %v254 = vperm.slane %v250, %v253
        %v256 = vmul.f32 %v189, %v254
        %258 = vset.pattern.permute.xlu0 0
        %259 = vperm.xlu0 %258, %v246
        %v260 = vpop.permute.xlu0 %259
        %v262 = vunpack.c.l.s4 839922192
        %v263 = vunpack.c.0.s8 %v262
        %v264 = vperm.slane %v260, %v263
        %v266 = vadd.f32 %v256, %v264
        %267 = vst [vmem:[%s188] sm:$0xff] %v266
        %s268 = sand.u32 %s96, 1
        %s269 = scalar_lea.sflag [#allocation4], %s268
        %s270 = sand.u32 %s96, 1
        %s271 = smul.addr %s270, 8
        %s272 = scalar_lea.vmem [#allocation5], %s271
        // Predicated region
        $region37: #{tpu_custom_call.1} parent=31 // pred_check
          %p273 = pneg %p106
        $region38: #{tpu_custom_call.1} parent=31 // pred_check_branch
          %275 = sbr.rel (%p273) target = $region40
        $region39: #{tpu_custom_call.1} parent=31 // pred_region
          %277 = vsyncadd %s269, 0
          %s278 = smul.addr %s20, 2
          %s279 = smul.addr %s278, 4
          %s280 = scalar_lea.hbm %s3, %s279
          %s282 = sshll.u32 %s272, 4
          %s283 = int_to_ptr.vmem [resolvable:$true] %s282
          %s284 = sshll.u32 %s280, 4
          %s285 = int_to_ptr.hbm [resolvable:$true] %s284
          %287 = dma.vmem_to_hbm [thread:$0]  %s283, 128, %s285, %s269
        $region40: #{tpu_custom_call.1} parent=31 // pred_fallthru
          _
      $region32: #{tpu_custom_call.1} parent=5 // pred_fallthru
        _
      %p288 = scmp.le.s32.totalorder 2, %s15
      // Predicated region
      $region41: #{tpu_custom_call.1} parent=5 // pred_check
        %p289 = pneg %p288
      $region42: #{tpu_custom_call.1} parent=5 // pred_check_branch
        %291 = sbr.rel (%p289) target = $region44
      $region43: #{tpu_custom_call.1} parent=5 // pred_region
        %s292 = ssub.s32 %s15, 2
        // Predicated region
        $region45: #{tpu_custom_call.1} parent=43 // pred_check
          %p293 = pneg %p112
        $region46: #{tpu_custom_call.1} parent=43 // pred_check_branch
          %295 = sbr.rel (%p293) target = $region48
        $region47: #{tpu_custom_call.1} parent=43 // pred_region
          %s296 = sand.u32 %s97, 1
          %s297 = scalar_lea.sflag [#allocation4], %s296
          %s298 = sand.u32 %s97, 1
          %s299 = smul.addr %s298, 8
          %s300 = scalar_lea.vmem [#allocation5], %s299
          %302 = dma.done %s297, 128
        $region48: #{tpu_custom_call.1} parent=43 // pred_fallthru
          _
      $region44: #{tpu_custom_call.1} parent=5 // pred_fallthru
        _
    $region6: #{tpu_custom_call.1} parent=1 // loop_footer
      %s19 = sadd.s32 1, %s15
    $region7: #{tpu_custom_call.1} parent=1 // loop_footer_branch
      %14 = sbr.rel target = $region3
    $region8: #{tpu_custom_call.1} parent=1 // loop_exit
      _
    %303 = vsyncpa [#allocation3], 1
    %s304 = scalar_lea.sflag [#allocation3], 1
    %305 = vsyncpa %s304, 1
    %306 = vsyncpa [#allocation4], 1
    %s307 = scalar_lea.sflag [#allocation4], 1
    %308 = vsyncpa %s307, 1

</llo_original>
